<compile_context>
chip_gen: v6e
topology: v6e:2x2x1
jax: 0.10.0
libtpu: 0.0.40
codegen_flags: <defaults>
</compile_context>

<pallas_src>
import functools

import jax
import jax.numpy as jnp
from jax.experimental import pallas as pl
from jax.experimental.pallas import tpu as pltpu


# --------------------------------------------------------------------------
# kernels
# --------------------------------------------------------------------------
def _kernel_single_k(x_ref, w_ref, scale_ref, shift_ref, o_ref, *, act, slope):
    # x_ref:     (tk,  tp)  bf16  activation slab  (K x spatial)
    # w_ref:     (tco, tk)  bf16  weight slab (resident across spatial blocks)
    # scale_ref: (tco, 1)   f32   BN per-channel scale
    # shift_ref: (tco, 1)   f32   BN per-channel shift (includes conv bias)
    acc = jnp.dot(w_ref[...], x_ref[...], preferred_element_type=jnp.float32)
    y = acc * scale_ref[...] + shift_ref[...]
    if act:
        y = jnp.where(y > 0, y, slope * y)          # LeakyReLU(0.1)
    o_ref[...] = y.astype(o_ref.dtype)


def _kernel_multi_k(x_ref, w_ref, scale_ref, shift_ref, o_ref, acc_ref, *,
                    act, slope):
    k = pl.program_id(3)

    @pl.when(k == 0)
    def _():
        acc_ref[...] = jnp.zeros_like(acc_ref)

    acc_ref[...] += jnp.dot(w_ref[...], x_ref[...],
                            preferred_element_type=jnp.float32)

    @pl.when(k == pl.num_programs(3) - 1)
    def _():
        y = acc_ref[...] * scale_ref[...] + shift_ref[...]
        if act:
            y = jnp.where(y > 0, y, slope * y)      # LeakyReLU(0.1)
        o_ref[...] = y.astype(o_ref.dtype)


# --------------------------------------------------------------------------
# host-side helpers
# --------------------------------------------------------------------------
def _largest_tile(dim, candidates):
    for c in candidates:
        if c <= dim:
            return c
    return dim  # full extent (dim smaller than the smallest candidate)


def _pick_tk(K, max_tk=2048):
    if K <= max_tk:
        return K                       # weight-stationary single k-step
    for c in (2048, 1024, 512, 256, 128):
        if K % c == 0:
            return c
    return K                           # fallback: one full-extent K block


def _vmem_budget_bytes():
    # Generation-aware cap: ~3/4 of physical VMEM
    #   v5e/v6e (128 MiB) -> ~96 MiB ; v7x (64 MiB / TC) -> ~48 MiB.
    try:
        cap = int(pltpu.get_tpu_info().vmem_capacity_bytes)
    except Exception:
        cap = 64 << 20                 # conservative (v7x per-TensorCore)
    return max((cap * 3) // 4, 16 << 20)


# --------------------------------------------------------------------------
# fused Conv2d + BN(eval) + LeakyReLU
# --------------------------------------------------------------------------
def conv_bn_lrelu(x, weight, bias, gamma, beta, run_mean, run_var, *,
                  stride=1, padding=0, dilation=1, groups=1, act=True,
                  eps=1e-5, compute_dtype=jnp.bfloat16, out_dtype=None):
    """Fused Conv2d(groups=1) + BatchNorm2d(eval) + LeakyReLU(0.1), NCHW."""
    assert groups == 1, "groups != 1 not supported"
    N, Cin, H, W = x.shape
    Cout, Cin_w, KH, KW = weight.shape
    assert Cin == Cin_w

    H_out = (H + 2 * padding - dilation * (KH - 1) - 1) // stride + 1
    W_out = (W + 2 * padding - dilation * (KW - 1) - 1) // stride + 1
    P = H_out * W_out                    # flattened spatial (lane) axis
    K = Cin * KH * KW                    # reduction axis
    out_dtype = x.dtype if out_dtype is None else out_dtype

    # ---- activation as (N, K, Ho*Wo), NCHW-native (no NHWC transpose).
    if KH == 1 and KW == 1 and stride == 1 and padding == 0:
        xp = x.reshape(N, Cin, P)        # pure view: zero data movement
    else:
        xpad = x
        if padding:
            xpad = jnp.pad(x, ((0, 0), (0, 0),
                               (padding, padding), (padding, padding)))
        cols = []
        for kh in range(KH):
            for kw in range(KW):
                h0 = kh * dilation
                w0 = kw * dilation
                cols.append(xpad[:, :, h0:h0 + stride * H_out:stride,
                                        w0:w0 + stride * W_out:stride])
        xp = cols[0] if len(cols) == 1 else jnp.concatenate(cols, axis=1)
        xp = xp.reshape(N, K, P)

    # weight -> (Cout, K); K ordered (kh, kw, ci) to match xp's row ordering.
    w_mat = jnp.transpose(weight, (0, 2, 3, 1)).reshape(Cout, K)

    # ---- eval-mode BN -> per-channel (scale, shift), applied in f32 epilogue
    #      (weights stay un-scaled bf16 to avoid amplifying quantization).
    inv_std = 1.0 / jnp.sqrt(run_var.astype(jnp.float32) + eps)
    scale = gamma.astype(jnp.float32) * inv_std                     # (Cout,)
    bias_f = (jnp.zeros((Cout,), jnp.float32) if bias is None
              else bias.astype(jnp.float32))
    shift = beta.astype(jnp.float32) + (
        bias_f - run_mean.astype(jnp.float32)) * scale              # (Cout,)
    scale2d = scale.reshape(Cout, 1)
    shift2d = shift.reshape(Cout, 1)

    # ---- bf16 operands, f32 MXU accumulation.
    xp = xp.astype(compute_dtype)
    w_mat = w_mat.astype(compute_dtype)

    # ---- tiling
    tco = Cout if Cout <= 256 else 256            # sublane (second-last) dim
    tk = _pick_tk(K)
    tp = _largest_tile(P, (1024, 512, 256, 128))  # lane dim

    in_b = jnp.dtype(compute_dtype).itemsize
    out_b = jnp.dtype(out_dtype).itemsize
    budget = _vmem_budget_bytes()

    def footprint(tp_):
        n = 2 * (tk * tp_ * in_b + tco * tk * in_b + tco * tp_ * out_b
                 + 2 * tco * 4)
        if tk != K:                                # multi-k: f32 accumulator
            n += tco * tp_ * 4
        return n

    while tp > 128 and (footprint(tp) * 3) // 2 > budget:
        tp //= 2

    kb = pl.cdiv(K, tk)
    grid = (N, pl.cdiv(Cout, tco), pl.cdiv(P, tp), kb)
    single_k = (kb == 1)

    vmem_limit = int(min(budget, max((footprint(tp) * 3) // 2, 16 << 20)))

    in_specs = [
        pl.BlockSpec((None, tk, tp), lambda n, j, p, k: (n, k, p)),   # x
        pl.BlockSpec((tco, tk), lambda n, j, p, k: (j, k)),           # weight
        pl.BlockSpec((tco, 1), lambda n, j, p, k: (j, 0)),            # scale
        pl.BlockSpec((tco, 1), lambda n, j, p, k: (j, 0)),            # shift
    ]
    out_specs = pl.BlockSpec((None, tco, tp), lambda n, j, p, k: (n, j, p))

    if single_k:
        kernel = functools.partial(_kernel_single_k, act=act, slope=0.1)
        scratch = []
    else:
        kernel = functools.partial(_kernel_multi_k, act=act, slope=0.1)
        scratch = [pltpu.VMEM((tco, tp), jnp.float32)]

    out = pl.pallas_call(
        kernel,
        out_shape=jax.ShapeDtypeStruct((N, Cout, P), out_dtype),
        grid_spec=pltpu.PrefetchScalarGridSpec(
            num_scalar_prefetch=0,
            grid=grid,
            in_specs=in_specs,
            out_specs=out_specs,
            scratch_shapes=scratch),
        compiler_params=pltpu.CompilerParams(
            dimension_semantics=("parallel", "parallel", "parallel",
                                 "arbitrary"),
            vmem_limit_bytes=vmem_limit),
    )(xp, w_mat, scale2d, shift2d)

    # Already NCHW; reshape is a free metadata view (no transpose, no slice).
    return out.reshape(N, Cout, H_out, W_out)


# --------------------------------------------------------------------------
# reference + test
# --------------------------------------------------------------------------
def _reference(x, weight, bias, gamma, beta, run_mean, run_var, *,
               stride, padding, dilation, act, eps=1e-5):
    conv = jax.lax.conv_general_dilated(
        x, weight, window_strides=(stride, stride),
        padding=[(padding, padding), (padding, padding)],
        rhs_dilation=(dilation, dilation),
        dimension_numbers=("NCHW", "OIHW", "NCHW"))
    if bias is not None:
        conv = conv + bias[None, :, None, None]
    bn = (conv - run_mean[None, :, None, None]) / jnp.sqrt(
        run_var[None, :, None, None] + eps)
    bn = bn * gamma[None, :, None, None] + beta[None, :, None, None]
    return jnp.where(bn > 0, bn, 0.1 * bn) if act else bn


if __name__ == "__main__":
    key = jax.random.PRNGKey(0)
    k0, k1, k2, k3, k4, k5, k6, k7 = jax.random.split(key, 8)

    N, Cin, Cout, H, W = 2, 4, 8, 16, 16
    x = jax.random.normal(k0, (N, Cin, H, W), dtype=jnp.float32)
    gamma = 1.0 + 0.1 * jax.random.normal(k3, (Cout,), dtype=jnp.float32)
    beta = 0.1 * jax.random.normal(k4, (Cout,), dtype=jnp.float32)
    run_mean = 0.1 * jax.random.normal(k5, (Cout,), dtype=jnp.float32)
    run_var = jnp.abs(1.0 + 0.1 * jax.random.normal(k6, (Cout,),
                                                    dtype=jnp.float32))

    # --- case 1: module defaults (ksize=1, stride=1, padding=0, act=True)
    w1 = jax.random.normal(k1, (Cout, Cin, 1, 1), dtype=jnp.float32) * 0.1
    b1 = jax.random.normal(k2, (Cout,), dtype=jnp.float32) * 0.1
    out1 = conv_bn_lrelu(x, w1, b1, gamma, beta, run_mean, run_var,
                         stride=1, padding=0, dilation=1, act=True)
    jax.block_until_ready(out1)
    ref1 = _reference(x, w1, b1, gamma, beta, run_mean, run_var,
                      stride=1, padding=0, dilation=1, act=True)
    assert out1.shape == ref1.shape == (N, Cout, H, W)
    assert jnp.max(jnp.abs(out1 - ref1)) < 3e-2   # bf16 operands tolerance

    # --- case 2: 3x3 conv, padding=1, no conv bias (typical conv+BN stack)
    w2 = jax.random.normal(k7, (Cout, Cin, 3, 3), dtype=jnp.float32) * 0.1
    out2 = conv_bn_lrelu(x, w2, None, gamma, beta, run_mean, run_var,
                         stride=1, padding=1, dilation=1, act=True)
    jax.block_until_ready(out2)
    ref2 = _reference(x, w2, None, gamma, beta, run_mean, run_var,
                      stride=1, padding=1, dilation=1, act=True)
    assert out2.shape == ref2.shape == (N, Cout, H, W)
    assert jnp.max(jnp.abs(out2 - ref2)) < 3e-2

    # --- case 3: 3x3, stride=2, padding=1, act=False (no LeakyReLU branch)
    out3 = conv_bn_lrelu(x, w2, None, gamma, beta, run_mean, run_var,
                         stride=2, padding=1, dilation=1, act=False)
    jax.block_until_ready(out3)
    ref3 = _reference(x, w2, None, gamma, beta, run_mean, run_var,
                      stride=2, padding=1, dilation=1, act=False)
    assert out3.shape == ref3.shape == (N, Cout, 8, 8)
    assert jnp.max(jnp.abs(out3 - ref3)) < 3e-2

    print("KERNEL_OK")
</pallas_src>

<mosaic_0001>
module attributes {stable_mosaic.version = 11 : i64} {
  func.func @_kernel_single_k(%arg0: i32, %arg1: i32, %arg2: i32, %arg3: i32, %arg4: memref<1x4x256xbf16, #tpu.memory_space<vmem>>, %arg5: memref<8x4xbf16, #tpu.memory_space<vmem>>, %arg6: memref<8x1xf32, #tpu.memory_space<vmem>>, %arg7: memref<8x1xf32, #tpu.memory_space<vmem>>, %arg8: memref<1x8x256xf32, #tpu.memory_space<vmem>>) attributes {dimension_semantics = [#tpu.dimension_semantics<parallel>, #tpu.dimension_semantics<parallel>, #tpu.dimension_semantics<parallel>, #tpu.dimension_semantics<arbitrary>], iteration_bounds = array<i64: 2, 1, 1, 1>, scalar_prefetch = 0 : i64, scratch_operands = 0 : i64, tpu.core_type = #tpu.core_type<tc>, window_params = [{transform_indices = @transform_0, window_bounds = array<i64: 1, 4, 256>}, {transform_indices = @transform_1, window_bounds = array<i64: 8, 4>}, {transform_indices = @transform_2, window_bounds = array<i64: 8, 1>}, {transform_indices = @transform_3, window_bounds = array<i64: 8, 1>}, {transform_indices = @transform_4, window_bounds = array<i64: 1, 8, 256>}]} {
    %c0 = arith.constant 0 : index
    %c0_0 = arith.constant 0 : index
    %0 = vector.load %arg5[%c0, %c0_0] : memref<8x4xbf16, #tpu.memory_space<vmem>>, vector<8x4xbf16>
    %c0_1 = arith.constant 0 : index
    %c0_2 = arith.constant 0 : index
    %c0_3 = arith.constant 0 : index
    %1 = vector.load %arg4[%c0_1, %c0_2, %c0_3] : memref<1x4x256xbf16, #tpu.memory_space<vmem>>, vector<1x4x256xbf16>
    %2 = vector.shape_cast %1 : vector<1x4x256xbf16> to vector<4x256xbf16>
    %cst = arith.constant dense<0.000000e+00> : vector<8x256xf32>
    %3 = tpu.matmul %0, %2, %cst {dimension_numbers = #tpu.dot_dimension_numbers<[1], [0], [0], [1], [0, 0, 1, 1], [], []>} : vector<8x4xbf16>, vector<4x256xbf16>, vector<8x256xf32> -> vector<8x256xf32>
    %c0_4 = arith.constant 0 : index
    %c0_5 = arith.constant 0 : index
    %4 = vector.load %arg6[%c0_4, %c0_5] : memref<8x1xf32, #tpu.memory_space<vmem>>, vector<8x1xf32>
    %5 = vector.broadcast %4 : vector<8x1xf32> to vector<8x256xf32>
    %6 = arith.mulf %3, %5 : vector<8x256xf32>
    %c0_6 = arith.constant 0 : index
    %c0_7 = arith.constant 0 : index
    %7 = vector.load %arg7[%c0_6, %c0_7] : memref<8x1xf32, #tpu.memory_space<vmem>>, vector<8x1xf32>
    %8 = vector.broadcast %7 : vector<8x1xf32> to vector<8x256xf32>
    %9 = arith.addf %6, %8 : vector<8x256xf32>
    %cst_8 = arith.constant 0.000000e+00 : f32
    %10 = vector.broadcast %cst_8 : f32 to vector<8x256xf32>
    %11 = arith.cmpf ogt, %9, %10 : vector<8x256xf32>
    %cst_9 = arith.constant 1.000000e-01 : f32
    %12 = vector.broadcast %cst_9 : f32 to vector<8x256xf32>
    %13 = arith.mulf %12, %9 : vector<8x256xf32>
    %14 = arith.select %11, %9, %13 : vector<8x256xi1>, vector<8x256xf32>
    %c0_10 = arith.constant 0 : index
    %c0_11 = arith.constant 0 : index
    %c0_12 = arith.constant 0 : index
    %15 = vector.load %arg8[%c0_10, %c0_11, %c0_12] : memref<1x8x256xf32, #tpu.memory_space<vmem>>, vector<1x8x256xf32>
    %16 = vector.shape_cast %15 : vector<1x8x256xf32> to vector<8x256xf32>
    %17 = vector.shape_cast %14 : vector<8x256xf32> to vector<1x8x256xf32>
    tpu.vector_store %arg8[%c0_10, %c0_11, %c0_12], %17 {strides = array<i32>} : memref<1x8x256xf32, #tpu.memory_space<vmem>>, vector<1x8x256xf32>,
    return
  }
  func.func @transform_0(%arg0: i32, %arg1: i32, %arg2: i32, %arg3: i32) -> (i32, i32, i32) {
    %c0_i32 = arith.constant 0 : i32
    return %arg0, %arg3, %arg2 : i32, i32, i32
  }
  func.func @transform_1(%arg0: i32, %arg1: i32, %arg2: i32, %arg3: i32) -> (i32, i32) {
    %c0_i32 = arith.constant 0 : i32
    return %arg1, %arg3 : i32, i32
  }
  func.func @transform_2(%arg0: i32, %arg1: i32, %arg2: i32, %arg3: i32) -> (i32, i32) {
    %c0_i32 = arith.constant 0 : i32
    %c0_i32_0 = arith.constant 0 : i32
    return %arg1, %c0_i32 : i32, i32
  }
  func.func @transform_3(%arg0: i32, %arg1: i32, %arg2: i32, %arg3: i32) -> (i32, i32) {
    %c0_i32 = arith.constant 0 : i32
    %c0_i32_0 = arith.constant 0 : i32
    return %arg1, %c0_i32 : i32, i32
  }
  func.func @transform_4(%arg0: i32, %arg1: i32, %arg2: i32, %arg3: i32) -> (i32, i32, i32) {
    %c0_i32 = arith.constant 0 : i32
    return %arg0, %arg1, %arg2 : i32, i32, i32
  }
}

</mosaic_0001>

<llo_original>
// kernel: tpu_custom_call.1
$region0: #{tpu_custom_call.1}
  #allocation0 [shape = 'u32[]', space=smem, size = 0x4, offset = 0x4, fixed_abs, tag = 'smem constant byte address 0x4 - core index']
  #allocation1 [shape = 'u32[144,128]{1,0:T(1,128)}', space=vmem, size = 0x12000, scoped, tag = 'internal scratch']
  %s0 = inlined_call_operand.vmem [shape: bf16[2,4,256], index: 0, kind: input, shape index: {}]
  %s1 = inlined_call_operand.vmem [shape: bf16[8,4], index: 1, kind: input, shape index: {}]
  %s2 = inlined_call_operand.vmem [shape: f32[8,1], index: 2, kind: input, shape index: {}]
  %s3 = inlined_call_operand.vmem [shape: f32[8,1], index: 3, kind: input, shape index: {}]
  %s4 = inlined_call_operand.hbm [shape: f32[2,8,256], index: 4, kind: output, shape index: {}]
  %s5 = sld [smem:[#allocation0]]
  $region49: #{tpu_custom_call.1} parent=0
    _
  %s7 = ssub.s32 1, %s5
  %s8 = scalar_select 0, %s7, %s5
  $region1: #{tpu_custom_call.1} parent=0
    #allocation2 [shape = 'u8[16384]{0}', space=vmem, size = 0x4000, scoped, tag = 'output window, operand 0']
    #allocation3 [shape = 's32[2]{0}', space=sflag, size = 0x8, scoped, tag = 'scoped memory for tpu_custom_call.1']
    %9 = vsyncpa [#allocation3], 0
    %s10 = scalar_lea.sflag [#allocation3], 1
    %11 = vsyncpa %s10, 0
    loop: start=0, step=1, limit=4
    $region2: #{tpu_custom_call.1} parent=1 // loop_pre_header
      _
    $region3: #{tpu_custom_call.1} parent=1 // loop_header
      %s13 = sphi 0, %s17
      %p14 = scmp.ge.s32.totalorder %s13, 4
      %s20 = sphi 0, %s46
      %s21 = sphi 0, %s42
      %s22 = sphi 0, %s38
      %s23 = sphi 0, %s34
      %s24 = sphi 0, %s20
      %s25 = sphi 0, %s21
      %s26 = sphi 0, %s22
      %s27 = sphi 0, %s23
      %s28 = sphi 0, %s24
      %s29 = sphi 0, %s25
      %s30 = sphi 0, %s26
      %s31 = sphi 0, %s27
      %s53 = sphi 0, %s55
      %s56 = sphi 0, %s53
      %s57 = sphi 0, %s56
      %s73 = sphi 0, %s57
      %s81 = sphi 0, %s83
      %s84 = sphi 0, %s81
      %s85 = sphi 0, %s84
      %s101 = sphi 0, %s85
      %s107 = sphi 0, %s109
      %s110 = sphi 0, %s107
      %s111 = sphi 0, %s110
      %s127 = sphi 0, %s111
      %s133 = sphi 0, %s135
      %s136 = sphi 0, %s133
      %s137 = sphi 0, %s136
      %s153 = sphi 0, %s137
      %s163 = sphi 0, %s165
      %s166 = sphi 0, %s163
      %s167 = sphi 0, %s166
      %s183 = sphi 0, %s167
    $region4: #{tpu_custom_call.1} parent=1 // loop_header_branch
      %16 = sbr.rel (%p14) target = $region8
    $region5: #{tpu_custom_call.1} parent=1 // loop_body
      %s18 = ssub.s32 %s13, 1
      %s19 = ssub.s32 %s13, 2
      %s32 = sadd.s32 1, %s23
      %p33 = scmp.ge.s32.totalorder %s32, 1
      %s34 = scalar_select %p33, 0, %s32
      %s35 = sadd.s32 1, %s22
      %s36 = scalar_select %p33, %s35, %s22
      %p37 = scmp.ge.s32.totalorder %s36, 1
      %s38 = scalar_select %p37, 0, %s36
      %s39 = sadd.s32 1, %s21
      %s40 = scalar_select %p37, %s39, %s21
      %p41 = scmp.ge.s32.totalorder %s40, 1
      %s42 = scalar_select %p41, 0, %s40
      %s43 = sadd.s32 1, %s20
      %s44 = scalar_select %p41, %s43, %s20
      %p45 = scmp.ge.s32.totalorder %s44, 2
      %s46 = scalar_select %p45, 0, %s44
      %s47 = ssub.s32 %s20, %s46
      %s48 = ssub.s32 %s23, %s34
      %s49 = sor.u32 %s47, %s48
      %s50 = ssub.s32 %s22, %s38
      %s51 = sor.u32 %s49, %s50
      %p52 = scmp.eq.s32.totalorder %s51, 0
      %s54 = sadd.s32 %s53, 1
      %s55 = scalar_select %p52, %s53, %s54
      %p58 = pneg %p52
      %p59 = scmp.eq.s32.totalorder %s13, 1
      %p60 = por %p58, %p59
      %p61 = scmp.ne.s32.totalorder %s53, %s56
      %p62 = scmp.eq.s32.totalorder %s13, 0
      %p63 = por %p61, %p62
      %p64 = scmp.ne.s32.totalorder %s53, %s56
      %p65 = scmp.eq.s32.totalorder %s18, 1
      %p66 = por %p64, %p65
      %p67 = scmp.ne.s32.totalorder %s56, %s57
      %p68 = scmp.eq.s32.totalorder %s18, 0
      %p69 = por %p67, %p68
      %p70 = scmp.ne.s32.totalorder %s56, %s57
      %p71 = scmp.eq.s32.totalorder %s19, 1
      %p72 = por %p70, %p71
      %p74 = scmp.ne.s32.totalorder %s57, %s73
      %p75 = scmp.eq.s32.totalorder %s19, 0
      %p76 = por %p74, %p75
      %s77 = ssub.s32 %s21, %s42
      %s78 = ssub.s32 %s23, %s34
      %s79 = sor.u32 %s77, %s78
      %p80 = scmp.eq.s32.totalorder %s79, 0
      %s82 = sadd.s32 %s81, 1
      %s83 = scalar_select %p80, %s81, %s82
      %p86 = pneg %p80
      %p87 = scmp.eq.s32.totalorder %s13, 1
      %p88 = por %p86, %p87
      %p89 = scmp.ne.s32.totalorder %s81, %s84
      %p90 = scmp.eq.s32.totalorder %s13, 0
      %p91 = por %p89, %p90
      %p92 = scmp.ne.s32.totalorder %s81, %s84
      %p93 = scmp.eq.s32.totalorder %s18, 1
      %p94 = por %p92, %p93
      %p95 = scmp.ne.s32.totalorder %s84, %s85
      %p96 = scmp.eq.s32.totalorder %s18, 0
      %p97 = por %p95, %p96
      %p98 = scmp.ne.s32.totalorder %s84, %s85
      %p99 = scmp.eq.s32.totalorder %s19, 1
      %p100 = por %p98, %p99
      %p102 = scmp.ne.s32.totalorder %s85, %s101
      %p103 = scmp.eq.s32.totalorder %s19, 0
      %p104 = por %p102, %p103
      %s105 = ssub.s32 %s21, %s42
      %p106 = scmp.eq.s32.totalorder %s105, 0
      %s108 = sadd.s32 %s107, 1
      %s109 = scalar_select %p106, %s107, %s108
      %p112 = pneg %p106
      %p113 = scmp.eq.s32.totalorder %s13, 1
      %p114 = por %p112, %p113
      %p115 = scmp.ne.s32.totalorder %s107, %s110
      %p116 = scmp.eq.s32.totalorder %s13, 0
      %p117 = por %p115, %p116
      %p118 = scmp.ne.s32.totalorder %s107, %s110
      %p119 = scmp.eq.s32.totalorder %s18, 1
      %p120 = por %p118, %p119
      %p121 = scmp.ne.s32.totalorder %s110, %s111
      %p122 = scmp.eq.s32.totalorder %s18, 0
      %p123 = por %p121, %p122
      %p124 = scmp.ne.s32.totalorder %s110, %s111
      %p125 = scmp.eq.s32.totalorder %s19, 1
      %p126 = por %p124, %p125
      %p128 = scmp.ne.s32.totalorder %s111, %s127
      %p129 = scmp.eq.s32.totalorder %s19, 0
      %p130 = por %p128, %p129
      %s131 = ssub.s32 %s21, %s42
      %p132 = scmp.eq.s32.totalorder %s131, 0
      %s134 = sadd.s32 %s133, 1
      %s135 = scalar_select %p132, %s133, %s134
      %p138 = pneg %p132
      %p139 = scmp.eq.s32.totalorder %s13, 1
      %p140 = por %p138, %p139
      %p141 = scmp.ne.s32.totalorder %s133, %s136
      %p142 = scmp.eq.s32.totalorder %s13, 0
      %p143 = por %p141, %p142
      %p144 = scmp.ne.s32.totalorder %s133, %s136
      %p145 = scmp.eq.s32.totalorder %s18, 1
      %p146 = por %p144, %p145
      %p147 = scmp.ne.s32.totalorder %s136, %s137
      %p148 = scmp.eq.s32.totalorder %s18, 0
      %p149 = por %p147, %p148
      %p150 = scmp.ne.s32.totalorder %s136, %s137
      %p151 = scmp.eq.s32.totalorder %s19, 1
      %p152 = por %p150, %p151
      %p154 = scmp.ne.s32.totalorder %s137, %s153
      %p155 = scmp.eq.s32.totalorder %s19, 0
      %p156 = por %p154, %p155
      %s157 = ssub.s32 %s20, %s46
      %s158 = ssub.s32 %s21, %s42
      %s159 = sor.u32 %s157, %s158
      %s160 = ssub.s32 %s22, %s38
      %s161 = sor.u32 %s159, %s160
      %p162 = scmp.eq.s32.totalorder %s161, 0
      %s164 = sadd.s32 %s163, 1
      %s165 = scalar_select %p162, %s163, %s164
      %p168 = pneg %p162
      %p169 = scmp.eq.s32.totalorder %s13, 1
      %p170 = por %p168, %p169
      %p171 = scmp.ne.s32.totalorder %s163, %s166
      %p172 = scmp.eq.s32.totalorder %s13, 0
      %p173 = por %p171, %p172
      %p174 = scmp.ne.s32.totalorder %s163, %s166
      %p175 = scmp.eq.s32.totalorder %s18, 1
      %p176 = por %p174, %p175
      %p177 = scmp.ne.s32.totalorder %s166, %s167
      %p178 = scmp.eq.s32.totalorder %s18, 0
      %p179 = por %p177, %p178
      %p180 = scmp.ne.s32.totalorder %s166, %s167
      %p181 = scmp.eq.s32.totalorder %s19, 1
      %p182 = por %p180, %p181
      %p184 = scmp.ne.s32.totalorder %s167, %s183
      %p185 = scmp.eq.s32.totalorder %s19, 0
      %p186 = por %p184, %p185
      %p187 = scmp.le.s32.totalorder 1, %s13
      %p188 = scmp.lt.s32.totalorder %s13, 3
      %p189 = pnand %p187, %p188
      %p190 = pneg %p189
      // Predicated region
      $region9: #{tpu_custom_call.1} parent=5 // pred_check
        _
      $region10: #{tpu_custom_call.1} parent=5 // pred_check_branch
        %192 = sbr.rel (%p189) target = $region12
      $region11: #{tpu_custom_call.1} parent=5 // pred_region
        %s193 = ssub.s32 %s13, 1
        // Predicated region
        $region13: #{tpu_custom_call.1} parent=11 // pred_check
          %p194 = pneg %p97
        $region14: #{tpu_custom_call.1} parent=11 // pred_check_branch
          %196 = sbr.rel (%p194) target = $region16
        $region15: #{tpu_custom_call.1} parent=11 // pred_region
          %p197 = scmp.lt.s32.totalorder %s25, 0
          %s198 = scalar_select %p197, %s25, 0
          %p199 = scmp.lt.s32.totalorder %s27, 0
          %s200 = scalar_select %p199, %s27, 0
          %s201 = sadd.s32 %s200, %s198
          %s202 = smul.addr %s201, 4
          %s203 = scalar_lea.vmem %s1, %s202
        $region16: #{tpu_custom_call.1} parent=11 // pred_fallthru
          _
        // Predicated region
        $region17: #{tpu_custom_call.1} parent=11 // pred_check
          %p204 = pneg %p123
        $region18: #{tpu_custom_call.1} parent=11 // pred_check_branch
          %206 = sbr.rel (%p204) target = $region20
        $region19: #{tpu_custom_call.1} parent=11 // pred_region
          %p207 = scmp.lt.s32.totalorder %s25, 0
          %s208 = scalar_select %p207, %s25, 0
          %s209 = smul.addr %s208, 8
          %s210 = scalar_lea.vmem %s2, %s209
        $region20: #{tpu_custom_call.1} parent=11 // pred_fallthru
          _
        // Predicated region
        $region21: #{tpu_custom_call.1} parent=11 // pred_check
          %p211 = pneg %p149
        $region22: #{tpu_custom_call.1} parent=11 // pred_check_branch
          %213 = sbr.rel (%p211) target = $region24
        $region23: #{tpu_custom_call.1} parent=11 // pred_region
          %p214 = scmp.lt.s32.totalorder %s25, 0
          %s215 = scalar_select %p214, %s25, 0
          %s216 = smul.addr %s215, 8
          %s217 = scalar_lea.vmem %s3, %s216
        $region24: #{tpu_custom_call.1} parent=11 // pred_fallthru
          _
      $region12: #{tpu_custom_call.1} parent=5 // pred_fallthru
        _
      %p218 = scmp.lt.s32.totalorder %s13, 2
      // Predicated region
      $region25: #{tpu_custom_call.1} parent=5 // pred_check
        %p219 = pneg %p218
      $region26: #{tpu_custom_call.1} parent=5 // pred_check_branch
        %221 = sbr.rel (%p219) target = $region28
      $region27: #{tpu_custom_call.1} parent=5 // pred_region
        // Predicated region
        $region29: #{tpu_custom_call.1} parent=27 // pred_check
          %p222 = pneg %p63
        $region30: #{tpu_custom_call.1} parent=27 // pred_check_branch
          %224 = sbr.rel (%p222) target = $region32
        $region31: #{tpu_custom_call.1} parent=27 // pred_region
          %s225 = smul.u32 2, %s22
          %p226 = scmp.lt.s32.totalorder %s20, 1
          %s227 = scalar_select %p226, %s20, 1
          %p228 = scmp.lt.s32.totalorder %s23, 0
          %s229 = scalar_select %p228, %s23, 0
          %p230 = scmp.lt.s32.totalorder %s225, 1
          %s231 = scalar_select %p230, %s225, 1
          %s232 = smul.addr %s229, 2
          %s233 = sadd.s32 %s231, %s232
          %s234 = smul.addr %s227, 2
          %s235 = sadd.s32 %s233, %s234
          %s236 = smul.addr %s235, 2
          %s237 = scalar_lea.vmem %s0, %s236
          %s238 = smul.u32 2, %s22
        $region32: #{tpu_custom_call.1} parent=27 // pred_fallthru
          _
      $region28: #{tpu_custom_call.1} parent=5 // pred_fallthru
        _
      %p239 = scmp.le.s32.totalorder 1, %s13
      %p240 = scmp.lt.s32.totalorder %s13, 3
      %p241 = pnand %p239, %p240
      %p242 = pneg %p241
      // Predicated region
      $region33: #{tpu_custom_call.1} parent=5 // pred_check
        _
      $region34: #{tpu_custom_call.1} parent=5 // pred_check_branch
        %244 = sbr.rel (%p241) target = $region36
      $region35: #{tpu_custom_call.1} parent=5 // pred_region
        %s245 = ssub.s32 %s13, 1
        %s246 = smul.u32 2, %s26
        %p247 = scmp.lt.s32.totalorder %s24, 1
        %s248 = scalar_select %p247, %s24, 1
        %p249 = scmp.lt.s32.totalorder %s27, 0
        %s250 = scalar_select %p249, %s27, 0
        %p251 = scmp.lt.s32.totalorder %s246, 1
        %s252 = scalar_select %p251, %s246, 1
        %s253 = smul.addr %s250, 2
        %s254 = sadd.s32 %s252, %s253
        %s255 = smul.addr %s248, 2
        %s256 = sadd.s32 %s254, %s255
        %s257 = smul.addr %s256, 2
        %s258 = scalar_lea.vmem %s0, %s257
        %p259 = pneg %p69
        %p260 = pneg %p66
        %p261 = scmp.lt.s32.totalorder %s25, 0
        %s262 = scalar_select %p261, %s25, 0
        %p263 = scmp.lt.s32.totalorder %s27, 0
        %s264 = scalar_select %p263, %s27, 0
        %s265 = sadd.s32 %s264, %s262
        %s266 = smul.addr %s265, 4
        %s267 = scalar_lea.vmem %s1, %s266
        %p268 = pneg %p97
        %p269 = pneg %p94
        %p270 = scmp.lt.s32.totalorder %s25, 0
        %s271 = scalar_select %p270, %s25, 0
        %s272 = smul.addr %s271, 8
        %s273 = scalar_lea.vmem %s2, %s272
        %p274 = pneg %p123
        %p275 = pneg %p120
        %p276 = scmp.lt.s32.totalorder %s25, 0
        %s277 = scalar_select %p276, %s25, 0
        %s278 = smul.addr %s277, 8
        %s279 = scalar_lea.vmem %s3, %s278
        %p280 = pneg %p149
        %p281 = pneg %p146
        %p282 = pneg %p179
        %p283 = pneg %p176
        %s284 = sand.u32 %s166, 1
        %s285 = scalar_lea.sflag [#allocation3], %s284
        %s286 = sand.u32 %s166, 1
        %s287 = smul.addr %s286, 16
        %s288 = scalar_lea.vmem [#allocation2], %s287
        %s289 = smul.u32 2, %s26
        %p290 = scmp.lt.s32.totalorder %s24, 1
        %s291 = scalar_select %p290, %s24, 1
        %p292 = scmp.lt.s32.totalorder %s27, 0
        %s293 = scalar_select %p292, %s27, 0
        %p294 = scmp.lt.s32.totalorder %s289, 1
        %s295 = scalar_select %p294, %s289, 1
        %s296 = smul.addr %s293, 2
        %s297 = sadd.s32 %s295, %s296
        %s298 = smul.addr %s291, 2
        %s299 = sadd.s32 %s297, %s298
        %s300 = smul.addr %s299, 2
        %s301 = scalar_lea.vmem %s0, %s300
        %s302 = smul.u32 2, %s26
        %p303 = scmp.lt.s32.totalorder %s25, 0
        %s304 = scalar_select %p303, %s25, 0
        %p305 = scmp.lt.s32.totalorder %s27, 0
        %s306 = scalar_select %p305, %s27, 0
        %s307 = sadd.s32 %s306, %s304
        %s308 = smul.addr %s307, 4
        %s309 = scalar_lea.vmem %s1, %s308
        %p310 = scmp.lt.s32.totalorder %s25, 0
        %s311 = scalar_select %p310, %s25, 0
        %s312 = smul.addr %s311, 8
        %s313 = scalar_lea.vmem %s2, %s312
        %p314 = scmp.lt.s32.totalorder %s25, 0
        %s315 = scalar_select %p314, %s25, 0
        %s316 = smul.addr %s315, 8
        %s317 = scalar_lea.vmem %s3, %s316
        %s318 = smul.u32 2, %s26
        %v320 = vld [vmem:[%s309] sm:$0xf]
        %v321 = vld [vmem:[%s301] sm:$0xf]
        %v324 = vunpack.c.l.s4 1983009808
        %v325 = vunpack.c.0.s8 %v324
        %v326 = vlaneseq
        %v327 = vshrl.u32 %v326, 7
        %v328 = vsub.s32 %v325, %v327
        %v329 = vrot.slane %v321, %v328
        %v330 = vcombine.high %v329, %v329
        %vm331 = vcmask 31744
        %v333 = vsel %vm331, %v320, 0
        %vm335 = vcmask 1041408
        %v337 = vsel %vm335, %v329, 0
        %v340 = vsel %vm335, %v330, 0
        %342 = vmatprep.subr.bf16.mxu0 0
        %343 = vmatpush1.bf16.msra.mxu0 0
        %344 = vmatprep.subr.bf16.mxu0 0
        %345 = vmatpush1.bf16.msra.mxu0 0
        %346 = vmatprep.subr.bf16.mxu0 0
        %347 = vmatpush1.bf16.msra.mxu0 0
        %348 = vmatprep.subr.bf16.mxu0 0
        %349 = vmatpush1.bf16.msra.mxu0 0
        %350 = vmatprep.subr.bf16.mxu0 0
        %351 = vmatpush1.bf16.msra.mxu0 0
        %352 = vmatprep.subr.bf16.mxu0 0
        %353 = vmatpush1.bf16.msra.mxu0 0
        %354 = vmatprep.subr.bf16.mxu0 0
        %355 = vmatpush1.bf16.msra.mxu0 0
        %356 = vmatprep.subr.bf16.mxu0 %v340
        %357 = vmatpush1.bf16.msra.mxu0 %v337
        %358 = vmatprep.subr.bf16.mxu0 0
        %359 = vmatpush2.bf16.msra.mxu0 0
        %360 = vmatprep.subr.bf16.mxu0 0
        %361 = vmatpush2.bf16.msra.mxu0 0
        %362 = vmatprep.subr.bf16.mxu0 0
        %363 = vmatpush2.bf16.msra.mxu0 0
        %364 = vmatprep.subr.bf16.mxu0 0
        %365 = vmatpush2.bf16.msra.mxu0 0
        %366 = vmatprep.subr.bf16.mxu0 0
        %367 = vmatpush2.bf16.msra.mxu0 0
        %368 = vmatprep.subr.bf16.mxu0 0
        %369 = vmatpush2.bf16.msra.mxu0 0
        %370 = vmatprep.subr.bf16.mxu0 0
        %371 = vmatpush2.bf16.msra.mxu0 0
        %372 = vmatprep.subr.bf16.mxu0 0
        %373 = vmatpush2.bf16.msra.mxu0 0
        %374 = vmatprep.mubr.bf16.mxu0 0
        %375 = vmatmul.mubr.bf16.gmra.mxu0 %v333
        %v376 = vpop.f32.mrf.mxu0
        %v377 = vadd.f32 0.0, %v376
        %v378 = vpop.f32.mrf.mxu0
        %v379 = vadd.f32 0.0, %v378
        %v380 = vpop.f32.mrf.mxu0
        %v381 = vpop.f32.mrf.mxu0
        %382 = vdwg.mxu0
        %v383 = vld [vmem:[%s313] sm:$0xff]
        %385 = vset.pattern.permute.xlu0 0
        %386 = vperm.xlu0 %385, %v383
        %v387 = vpop.permute.xlu0 %386
        %v389 = vmul.f32 %v377, %v387
        %v390 = vmul.f32 %v379, %v387
        %v391 = vld [vmem:[%s317] sm:$0xff]
        %393 = vset.pattern.permute.xlu0 0
        %394 = vperm.xlu0 %393, %v391
        %v395 = vpop.permute.xlu0 %394
        %v397 = vadd.f32 %v389, %v395
        %v398 = vadd.f32 %v390, %v395
        %vm399 = vcmp.gt.f32.partialorder %v397, 0.0
        %vm400 = vcmp.gt.f32.partialorder %v398, 0.0
        %v401 = vmul.f32 %v397, 0.1
        %v402 = vmul.f32 %v398, 0.1
        %v403 = vsel %vm399, %v397, %v401
        %v404 = vsel %vm400, %v398, %v402
        %405 = vst [vmem:[%s288] sm:$0xff] %v403
        %406 = vst [vmem:[%s288 + $0x8] sm:$0xff] %v404
        %s407 = sand.u32 %s166, 1
        %s408 = scalar_lea.sflag [#allocation3], %s407
        %s409 = sand.u32 %s166, 1
        %s410 = smul.addr %s409, 16
        %s411 = scalar_lea.vmem [#allocation2], %s410
        // Predicated region
        $region37: #{tpu_custom_call.1} parent=35 // pred_check
          %p412 = pneg %p176
        $region38: #{tpu_custom_call.1} parent=35 // pred_check_branch
          %414 = sbr.rel (%p412) target = $region40
        $region39: #{tpu_custom_call.1} parent=35 // pred_region
          %s415 = smul.u32 2, %s26
          %s417 = ssub.s32 256, 256
          %418 = vsyncadd %s408, %s417
          %s419 = smul.addr %s25, 2
          %s420 = sadd.s32 %s415, %s419
          %s421 = smul.addr %s24, 2
          %s422 = sadd.s32 %s420, %s421
          %s423 = smul.addr %s422, 128
          %s424 = scalar_lea.hbm %s4, %s423
          %s426 = sshll.u32 %s411, 4
          %s427 = int_to_ptr.vmem [resolvable:$true] %s426
          %429 = dma.vmem_to_hbm [thread:$0]  %s427, 256, %s424, %s408
        $region40: #{tpu_custom_call.1} parent=35 // pred_fallthru
          _
      $region36: #{tpu_custom_call.1} parent=5 // pred_fallthru
        _
      %p430 = scmp.le.s32.totalorder 2, %s13
      // Predicated region
      $region41: #{tpu_custom_call.1} parent=5 // pred_check
        %p431 = pneg %p430
      $region42: #{tpu_custom_call.1} parent=5 // pred_check_branch
        %433 = sbr.rel (%p431) target = $region44
      $region43: #{tpu_custom_call.1} parent=5 // pred_region
        %s434 = ssub.s32 %s13, 2
        // Predicated region
        $region45: #{tpu_custom_call.1} parent=43 // pred_check
          %p435 = pneg %p182
        $region46: #{tpu_custom_call.1} parent=43 // pred_check_branch
          %437 = sbr.rel (%p435) target = $region48
        $region47: #{tpu_custom_call.1} parent=43 // pred_region
          %s438 = sand.u32 %s167, 1
          %s439 = scalar_lea.sflag [#allocation3], %s438
          %s440 = sand.u32 %s167, 1
          %s441 = smul.addr %s440, 16
          %s442 = scalar_lea.vmem [#allocation2], %s441
          %443 = dma.done %s439, 256
        $region48: #{tpu_custom_call.1} parent=43 // pred_fallthru
          _
      $region44: #{tpu_custom_call.1} parent=5 // pred_fallthru
        _
    $region6: #{tpu_custom_call.1} parent=1 // loop_footer
      %s17 = sadd.s32 1, %s13
    $region7: #{tpu_custom_call.1} parent=1 // loop_footer_branch
      %12 = sbr.rel target = $region3
    $region8: #{tpu_custom_call.1} parent=1 // loop_exit
      _
    %444 = vsyncpa [#allocation3], 1
    %s445 = scalar_lea.sflag [#allocation3], 1
    %446 = vsyncpa %s445, 1

</llo_original>
